<compile_context>
chip_gen: v5e
topology: v5e:2x2
jax: 0.10.0
libtpu: 0.0.40
codegen_flags: <defaults>
</compile_context>

<pallas_src>
import functools

import jax
import jax.numpy as jnp
from jax.experimental import pallas as pl
from jax.experimental.pallas import tpu as pltpu


def _round_up(x, m):
    return ((x + m - 1) // m) * m


def _generate_node_kernel(
    ne_ref,     # (Bt, H)        f32 node-embedding tile
    emb_ref,    # (Bt, E)        f32 node-label-embedding tile
    w_ne_ref,   # (H, 4*h_pad)   bf16 packed weights, rows matching node_embedding
    w_emb_ref,  # (E, 4*h_pad)   bf16 packed weights, rows matching node_label_
    b_ref,      # (1, 4*h_pad)   f32 packed bias [bl | br | blg | brg]
    out_ref,    # (Bt, 2*h_pad)  output slab [l | r]  (lane-dense)
):
    cdt = w_ne_ref.dtype  # bf16 compute dtype for the MXU operands

    # One fused projection: x @ [Wl|Wr|Wlg|Wrg] with the K dimension split so
    # the concatenated activation never exists in HBM.  f32 accumulation.
    logits = (
        jnp.dot(ne_ref[...].astype(cdt), w_ne_ref[...],
                preferred_element_type=jnp.float32)
        + jnp.dot(emb_ref[...].astype(cdt), w_emb_ref[...],
                  preferred_element_type=jnp.float32)
        + b_ref[...]
    )  # (Bt, 4*h_pad) f32

    # Column layout lets us do tanh(first half) * sigmoid(second half) with
    # slice points on 128-lane boundaries -> no concat, one contiguous store.
    half = out_ref.shape[-1]  # 2 * h_pad
    out_ref[...] = (
        jnp.tanh(logits[:, :half]) * jax.nn.sigmoid(logits[:, half:])
    ).astype(out_ref.dtype)


def pack_params(raw_params, weight_dtype=jnp.bfloat16):
    """Pack PyTorch-layout params into the kernel-ready fused layout (do once).

    Column order is [l | r | lg | rg], each block zero-padded to
    h_pad = max(round_up(H, 64), 64) columns so the output slab (2*h_pad) is
    lane-dense (>= 128 and a multiple of 128).
    """
    h = raw_params["wl"].shape[0]          # hidden_size (out dim of each Linear)
    h_pad = max(_round_up(h, 64), 64)

    def w_block(name):
        w = raw_params[name].T             # (H+E, H): PyTorch Linear is (out, in)
        if h_pad != h:
            w = jnp.pad(w, ((0, 0), (0, h_pad - h)))
        return w

    def b_block(name):
        b = raw_params[name]
        if h_pad != h:
            b = jnp.pad(b, (0, h_pad - h))
        return b

    w_all = jnp.concatenate([w_block(k) for k in ("wl", "wr", "wlg", "wrg")],
                            axis=1)                       # (H+E, 4*h_pad)
    b_all = jnp.concatenate([b_block(k) for k in ("bl", "br", "blg", "brg")],
                            axis=0)[None, :]              # (1, 4*h_pad)
    return {
        "embeddings": raw_params["embeddings"].astype(jnp.float32),
        "w_ne": w_all[:h].astype(weight_dtype),    # rows matching node_embedding
        "w_emb": w_all[h:].astype(weight_dtype),   # rows matching node_label_
        "b": b_all.astype(jnp.float32),
    }


@functools.partial(
    jax.jit, static_argnames=("batch_block", "min_pallas_rows", "out_dtype")
)
def generate_node_forward(node_embedding, node_label, packed, *,
                          batch_block=1024, min_pallas_rows=128,
                          out_dtype=jnp.float32):
    """Forward pass of GenerateNode.

    node_embedding: (B, 1, H) float32
    node_label:     (B,)      int32
    packed: output of pack_params().
    Returns (l_child (B,H), r_child (B,H), node_label_ (B,E)).

    out_dtype: dtype of l_child / r_child.  Pass jnp.bfloat16 if downstream
    consumers tolerate it (halves the writeback; kernel is HBM-bound).
    """
    # --- glue: embedding lookup + squeeze (dropout = identity in eval) -------
    # TODO(synk): training-mode dropout (hidden_dropout_prob) not implemented;
    # eval-mode semantics (identity) are reproduced here.
    node_label_ = jnp.take(packed["embeddings"], node_label, axis=0)  # (B, E)
    ne = jnp.squeeze(node_embedding, axis=1)                          # (B, H)

    b_rows, h = ne.shape
    e = node_label_.shape[1]
    h_pad = packed["w_ne"].shape[1] // 4

    # --- small-batch fallback: custom-call + grid overhead dominates ---------
    if b_rows < min_pallas_rows:
        cdt = packed["w_ne"].dtype
        logits = (
            jnp.dot(ne.astype(cdt), packed["w_ne"],
                    preferred_element_type=jnp.float32)
            + jnp.dot(node_label_.astype(cdt), packed["w_emb"],
                      preferred_element_type=jnp.float32)
            + packed["b"]
        )
        prod = jnp.tanh(logits[:, :2 * h_pad]) * jax.nn.sigmoid(logits[:, 2 * h_pad:])
        l_child = prod[:, :h].astype(out_dtype)
        r_child = prod[:, h_pad:h_pad + h].astype(out_dtype)
        return l_child, r_child, node_label_

    # --- Pallas path: batch-tiled, weight-resident ---------------------------
    out_itemsize = jnp.dtype(out_dtype).itemsize
    w_itemsize = packed["w_ne"].dtype.itemsize

    b8 = _round_up(max(b_rows, 8), 8)   # sublane-aligned row count

    # Per-row VMEM bytes: double-buffered ne/emb inputs, double-buffered
    # output slab, and the f32 (bt, 4*h_pad) logits intermediate.
    row_bytes = 2 * (h * 4) + 2 * (e * 4) + 2 * (2 * h_pad * out_itemsize) \
        + 4 * h_pad * 4
    # Resident operands (Buffered(1): single buffer) + f32 bias.
    weight_bytes = (h + e) * 4 * h_pad * w_itemsize + 4 * h_pad * 4

    # VMEM budget: per-generation capacity if queryable, else assume the
    # smallest generation (v7x: 64 MiB) so we never OOM.
    try:
        vmem_total = int(pltpu.get_tpu_info().vmem_capacity_bytes)
    except Exception:
        vmem_total = 64 * 1024 * 1024
    tile_budget = max(int(vmem_total * 0.7) - weight_bytes, 64 * 1024)
    bt_cap = max(8, min(batch_block, (tile_budget // row_bytes) // 8 * 8))

    # >= 2 grid steps whenever the batch allows it (so ("parallel",) shards
    # across v7x's two TensorCores) and padding waste < 8 rows per step.
    n_steps = 1 if b8 <= 8 else max(2, pl.cdiv(b8, bt_cap))
    bt = _round_up(pl.cdiv(b8, n_steps), 8)
    b_pad = n_steps * bt

    ne_p = ne if b_pad == b_rows else jnp.pad(ne, ((0, b_pad - b_rows), (0, 0)))
    emb_p = (node_label_ if b_pad == b_rows
             else jnp.pad(node_label_, ((0, b_pad - b_rows), (0, 0))))

    cost = pl.CostEstimate(
        flops=2 * b_pad * (h + e) * 4 * h_pad,
        transcendentals=4 * b_pad * h_pad,
        bytes_accessed=(weight_bytes + b_pad * (h + e) * 4
                        + b_pad * 2 * h_pad * out_itemsize),
    )

    # Raise the scoped VMEM limit (defaults: 16 MiB v5e / 32 MiB v6e-v7x) so
    # the larger batch tiles compile; keep headroom vs. physical capacity.
    vmem_limit = int(min(
        max(32 * 1024 * 1024, 2 * weight_bytes + bt * row_bytes + (4 << 20)),
        int(vmem_total * 0.9),
    ))

    out = pl.pallas_call(
        _generate_node_kernel,
        out_shape=jax.ShapeDtypeStruct((b_pad, 2 * h_pad), out_dtype),
        grid=(n_steps,),
        in_specs=[
            pl.BlockSpec((bt, h), lambda i: (i, 0)),       # ne tile
            pl.BlockSpec((bt, e), lambda i: (i, 0)),       # emb tile
            # Resident operands: constant index_map, single pipeline buffer.
            pl.BlockSpec((h, 4 * h_pad), lambda i: (0, 0),
                         pipeline_mode=pl.Buffered(1)),
            pl.BlockSpec((e, 4 * h_pad), lambda i: (0, 0),
                         pipeline_mode=pl.Buffered(1)),
            pl.BlockSpec((1, 4 * h_pad), lambda i: (0, 0),
                         pipeline_mode=pl.Buffered(1)),
        ],
        out_specs=pl.BlockSpec((bt, 2 * h_pad), lambda i: (i, 0)),
        compiler_params=pltpu.CompilerParams(
            dimension_semantics=("parallel",),
            vmem_limit_bytes=vmem_limit,
        ),
        cost_estimate=cost,
    )(ne_p, emb_p, packed["w_ne"], packed["w_emb"], packed["b"])

    l_child = out[:b_rows, :h]
    r_child = out[:b_rows, h_pad:h_pad + h]
    return l_child, r_child, node_label_


def init_params(key, hidden_size, embedding_size, op_nums):
    """PyTorch-layout parameters (Linear weight = (out, in), bias = (out,))."""
    keys = jax.random.split(key, 9)
    in_dim = hidden_size + embedding_size
    scale = 1.0 / jnp.sqrt(jnp.float32(in_dim))

    def lin_w(k):
        return jax.random.uniform(
            k, (hidden_size, in_dim), jnp.float32, -scale, scale
        )

    def lin_b(k):
        return jax.random.uniform(k, (hidden_size,), jnp.float32, -scale, scale)

    return {
        "embeddings": jax.random.normal(
            keys[0], (op_nums, embedding_size), jnp.float32
        ),
        "wl": lin_w(keys[1]), "bl": lin_b(keys[2]),
        "wlg": lin_w(keys[3]), "blg": lin_b(keys[4]),
        "wr": lin_w(keys[5]), "br": lin_b(keys[6]),
        "wrg": lin_w(keys[7]), "brg": lin_b(keys[8]),
    }


def _reference_outputs(raw_params, node_embedding, node_label):
    """f32 and bf16-weight references matching the PyTorch module (eval)."""
    ne = jnp.squeeze(node_embedding, axis=1)
    emb = jnp.take(raw_params["embeddings"], node_label, axis=0)
    x = jnp.concatenate([ne, emb], axis=1)

    def lin_f32(w, b):
        return x @ w.T + b

    xb = x.astype(jnp.bfloat16)

    def lin_b16(w, b):
        return jnp.dot(xb, w.T.astype(jnp.bfloat16),
                       preferred_element_type=jnp.float32) + b

    l32 = jnp.tanh(lin_f32(raw_params["wl"], raw_params["bl"])) * \
        jax.nn.sigmoid(lin_f32(raw_params["wlg"], raw_params["blg"]))
    r32 = jnp.tanh(lin_f32(raw_params["wr"], raw_params["br"])) * \
        jax.nn.sigmoid(lin_f32(raw_params["wrg"], raw_params["brg"]))
    l16 = jnp.tanh(lin_b16(raw_params["wl"], raw_params["bl"])) * \
        jax.nn.sigmoid(lin_b16(raw_params["wlg"], raw_params["blg"]))
    r16 = jnp.tanh(lin_b16(raw_params["wr"], raw_params["br"])) * \
        jax.nn.sigmoid(lin_b16(raw_params["wrg"], raw_params["brg"]))
    return (l32, r32), (l16, r16), emb


if __name__ == "__main__":
    HIDDEN = 32
    EMBED = 32
    OP_NUMS = 10

    key = jax.random.PRNGKey(0)
    k_param, k_emb, k_lbl, k_emb2, k_lbl2 = jax.random.split(key, 5)

    raw_params = init_params(k_param, HIDDEN, EMBED, OP_NUMS)
    packed = pack_params(raw_params)

    # ---- small batch: force the Pallas path (auto heuristic would fall back)
    B = 8
    node_embedding = jax.random.normal(k_emb, (B, 1, HIDDEN), jnp.float32)
    node_label = jax.random.randint(k_lbl, (B,), 0, OP_NUMS, jnp.int32)

    l_child, r_child, node_label_ = generate_node_forward(
        node_embedding, node_label, packed, min_pallas_rows=0
    )
    jax.block_until_ready((l_child, r_child, node_label_))

    (l32, r32), (l16, r16), emb = _reference_outputs(
        raw_params, node_embedding, node_label
    )
    assert l_child.shape == (B, HIDDEN) and r_child.shape == (B, HIDDEN)
    assert node_label_.shape == (B, EMBED)
    # bf16-weight reference (matches kernel arithmetic): tight tolerance.
    assert jnp.allclose(l_child, l16, atol=1e-4, rtol=1e-4)
    assert jnp.allclose(r_child, r16, atol=1e-4, rtol=1e-4)
    # full-f32 module reference: loose tolerance (bf16 weight quantization).
    assert jnp.allclose(l_child, l32, atol=5e-2)
    assert jnp.allclose(r_child, r32, atol=5e-2)
    assert jnp.allclose(node_label_, emb)

    # Small-batch XLA fallback path agrees with the kernel path.
    l_fb, r_fb, _ = generate_node_forward(node_embedding, node_label, packed)
    assert jnp.allclose(l_fb, l_child, atol=1e-4, rtol=1e-4)
    assert jnp.allclose(r_fb, r_child, atol=1e-4, rtol=1e-4)

    # ---- larger (still small) batch: exercises grid >= 2, row padding, tiling
    B2 = 300
    node_embedding2 = jax.random.normal(k_emb2, (B2, 1, HIDDEN), jnp.float32)
    node_label2 = jax.random.randint(k_lbl2, (B2,), 0, OP_NUMS, jnp.int32)

    l2, r2, nl2 = generate_node_forward(node_embedding2, node_label2, packed)
    jax.block_until_ready((l2, r2, nl2))

    (l32b, r32b), (l16b, r16b), emb2 = _reference_outputs(
        raw_params, node_embedding2, node_label2
    )
    assert l2.shape == (B2, HIDDEN) and r2.shape == (B2, HIDDEN)
    assert jnp.allclose(l2, l16b, atol=1e-4, rtol=1e-4)
    assert jnp.allclose(r2, r16b, atol=1e-4, rtol=1e-4)
    assert jnp.allclose(l2, l32b, atol=5e-2)
    assert jnp.allclose(r2, r32b, atol=5e-2)
    assert jnp.allclose(nl2, emb2)

    print("KERNEL_OK")
</pallas_src>

<mosaic_0001>
module attributes {stable_mosaic.version = 11 : i64} {
  func.func @_generate_node_kernel(%arg0: i32, %arg1: memref<8x32xf32, #tpu.memory_space<vmem>>, %arg2: memref<8x32xf32, #tpu.memory_space<vmem>>, %arg3: memref<32x256xbf16, #tpu.memory_space<vmem>>, %arg4: memref<32x256xbf16, #tpu.memory_space<vmem>>, %arg5: memref<1x256xf32, #tpu.memory_space<vmem>>, %arg6: memref<8x128xf32, #tpu.memory_space<vmem>>) attributes {dimension_semantics = [#tpu.dimension_semantics<parallel>], iteration_bounds = array<i64: 1>, scalar_prefetch = 0 : i64, scratch_operands = 0 : i64, tpu.core_type = #tpu.core_type<tc>, window_params = [{transform_indices = @transform_0, window_bounds = array<i64: 8, 32>}, {transform_indices = @transform_1, window_bounds = array<i64: 8, 32>}, {pipeline_mode = #tpu.pipeline_mode<synchronous>, transform_indices = @transform_2, window_bounds = array<i64: 32, 256>}, {pipeline_mode = #tpu.pipeline_mode<synchronous>, transform_indices = @transform_3, window_bounds = array<i64: 32, 256>}, {pipeline_mode = #tpu.pipeline_mode<synchronous>, transform_indices = @transform_4, window_bounds = array<i64: 1, 256>}, {transform_indices = @transform_5, window_bounds = array<i64: 8, 128>}]} {
    %c0 = arith.constant 0 : index
    %c0_0 = arith.constant 0 : index
    %0 = vector.load %arg1[%c0, %c0_0] : memref<8x32xf32, #tpu.memory_space<vmem>>, vector<8x32xf32>
    %1 = arith.truncf %0 : vector<8x32xf32> to vector<8x32xbf16>
    %c0_1 = arith.constant 0 : index
    %c0_2 = arith.constant 0 : index
    %2 = vector.load %arg3[%c0_1, %c0_2] : memref<32x256xbf16, #tpu.memory_space<vmem>>, vector<32x256xbf16>
    %cst = arith.constant dense<0.000000e+00> : vector<8x256xf32>
    %3 = tpu.matmul %1, %2, %cst {dimension_numbers = #tpu.dot_dimension_numbers<[1], [0], [0], [1], [0, 0, 1, 1], [], []>} : vector<8x32xbf16>, vector<32x256xbf16>, vector<8x256xf32> -> vector<8x256xf32>
    %c0_3 = arith.constant 0 : index
    %c0_4 = arith.constant 0 : index
    %4 = vector.load %arg2[%c0_3, %c0_4] : memref<8x32xf32, #tpu.memory_space<vmem>>, vector<8x32xf32>
    %5 = arith.truncf %4 : vector<8x32xf32> to vector<8x32xbf16>
    %c0_5 = arith.constant 0 : index
    %c0_6 = arith.constant 0 : index
    %6 = vector.load %arg4[%c0_5, %c0_6] : memref<32x256xbf16, #tpu.memory_space<vmem>>, vector<32x256xbf16>
    %cst_7 = arith.constant dense<0.000000e+00> : vector<8x256xf32>
    %7 = tpu.matmul %5, %6, %cst_7 {dimension_numbers = #tpu.dot_dimension_numbers<[1], [0], [0], [1], [0, 0, 1, 1], [], []>} : vector<8x32xbf16>, vector<32x256xbf16>, vector<8x256xf32> -> vector<8x256xf32>
    %8 = arith.addf %3, %7 : vector<8x256xf32>
    %c0_8 = arith.constant 0 : index
    %c0_9 = arith.constant 0 : index
    %9 = vector.load %arg5[%c0_8, %c0_9] : memref<1x256xf32, #tpu.memory_space<vmem>>, vector<1x256xf32>
    %10 = vector.broadcast %9 : vector<1x256xf32> to vector<8x256xf32>
    %11 = arith.addf %8, %10 : vector<8x256xf32>
    %12 = vector.extract_strided_slice %11 {offsets = [0, 0], sizes = [8, 128], strides = [1, 1]} : vector<8x256xf32> to vector<8x128xf32>
    %13 = math.tanh %12 : vector<8x128xf32>
    %14 = vector.extract_strided_slice %11 {offsets = [0, 128], sizes = [8, 128], strides = [1, 1]} : vector<8x256xf32> to vector<8x128xf32>
    %15 = arith.negf %14 : vector<8x128xf32>
    %16 = math.exp %15 : vector<8x128xf32>
    %cst_10 = arith.constant 1.000000e+00 : f32
    %17 = vector.broadcast %cst_10 : f32 to vector<8x128xf32>
    %18 = arith.addf %17, %16 : vector<8x128xf32>
    %19 = arith.divf %17, %18 : vector<8x128xf32>
    %20 = arith.mulf %13, %19 : vector<8x128xf32>
    %c0_11 = arith.constant 0 : index
    %c0_12 = arith.constant 0 : index
    %21 = vector.load %arg6[%c0_11, %c0_12] : memref<8x128xf32, #tpu.memory_space<vmem>>, vector<8x128xf32>
    tpu.vector_store %arg6[%c0_11, %c0_12], %20 {strides = array<i32>} : memref<8x128xf32, #tpu.memory_space<vmem>>, vector<8x128xf32>,
    return
  }
  func.func @transform_0(%arg0: i32) -> (i32, i32) {
    %c0_i32 = arith.constant 0 : i32
    %c0_i32_0 = arith.constant 0 : i32
    return %arg0, %c0_i32 : i32, i32
  }
  func.func @transform_1(%arg0: i32) -> (i32, i32) {
    %c0_i32 = arith.constant 0 : i32
    %c0_i32_0 = arith.constant 0 : i32
    return %arg0, %c0_i32 : i32, i32
  }
  func.func @transform_2(%arg0: i32) -> (i32, i32) {
    %c0_i32 = arith.constant 0 : i32
    %c0_i32_0 = arith.constant 0 : i32
    %c0_i32_1 = arith.constant 0 : i32
    return %c0_i32, %c0_i32_0 : i32, i32
  }
  func.func @transform_3(%arg0: i32) -> (i32, i32) {
    %c0_i32 = arith.constant 0 : i32
    %c0_i32_0 = arith.constant 0 : i32
    %c0_i32_1 = arith.constant 0 : i32
    return %c0_i32, %c0_i32_0 : i32, i32
  }
  func.func @transform_4(%arg0: i32) -> (i32, i32) {
    %c0_i32 = arith.constant 0 : i32
    %c0_i32_0 = arith.constant 0 : i32
    %c0_i32_1 = arith.constant 0 : i32
    return %c0_i32, %c0_i32_0 : i32, i32
  }
  func.func @transform_5(%arg0: i32) -> (i32, i32) {
    %c0_i32 = arith.constant 0 : i32
    %c0_i32_0 = arith.constant 0 : i32
    return %arg0, %c0_i32 : i32, i32
  }
}

</mosaic_0001>

<llo_original>
// kernel: generate_node_forward.1
$region0: #{generate_node_forward.1}
  #allocation0 [shape = 'u32[]', space=smem, size = 0x4, offset = 0x4, fixed_abs, tag = 'smem constant byte address 0x4 - core index']
  #allocation1 [shape = 'u32[72,128]{1,0:T(1,128)}', space=vmem, size = 0x9000, scoped, tag = 'internal scratch']
  %s0 = inlined_call_operand.vmem [shape: f32[8,32], index: 0, kind: input, shape index: {}]
  %s1 = inlined_call_operand.vmem [shape: f32[8,32], index: 1, kind: input, shape index: {}]
  %s2 = inlined_call_operand.vmem [shape: bf16[32,256], index: 2, kind: input, shape index: {}]
  %s3 = inlined_call_operand.vmem [shape: bf16[32,256], index: 3, kind: input, shape index: {}]
  %s4 = inlined_call_operand.vmem [shape: f32[1,256], index: 4, kind: input, shape index: {}]
  %s5 = inlined_call_operand.vmem [shape: f32[8,128], index: 5, kind: output, shape index: {}]
  %s6 = sld [smem:[#allocation0]]
  $region30: #{generate_node_forward.1} parent=0
    _
  %s8 = ssub.s32 1, %s6
  %s9 = scalar_select 0, %s8, %s6
  // Predicated region
  $region2: #{generate_node_forward.1} parent=0 // pred_check
    _
  $region3: #{generate_node_forward.1} parent=0 // pred_check_branch
    %11 = sbr.rel (0) target = $region5
  $region4: #{generate_node_forward.1} parent=0 // pred_region
    _
  $region5: #{generate_node_forward.1} parent=0 // pred_fallthru
    _
  // Predicated region
  $region6: #{generate_node_forward.1} parent=0 // pred_check
    _
  $region7: #{generate_node_forward.1} parent=0 // pred_check_branch
    %13 = sbr.rel (0) target = $region9
  $region8: #{generate_node_forward.1} parent=0 // pred_region
    _
  $region9: #{generate_node_forward.1} parent=0 // pred_fallthru
    _
  // Predicated region
  $region10: #{generate_node_forward.1} parent=0 // pred_check
    _
  $region11: #{generate_node_forward.1} parent=0 // pred_check_branch
    %15 = sbr.rel (0) target = $region13
  $region12: #{generate_node_forward.1} parent=0 // pred_region
    _
  $region13: #{generate_node_forward.1} parent=0 // pred_fallthru
    _
  // Predicated region
  $region14: #{generate_node_forward.1} parent=0 // pred_check
    _
  $region15: #{generate_node_forward.1} parent=0 // pred_check_branch
    %17 = sbr.rel (0) target = $region17
  $region16: #{generate_node_forward.1} parent=0 // pred_region
    _
  $region17: #{generate_node_forward.1} parent=0 // pred_fallthru
    _
  // Predicated region
  $region18: #{generate_node_forward.1} parent=0 // pred_check
    _
  $region19: #{generate_node_forward.1} parent=0 // pred_check_branch
    %19 = sbr.rel (0) target = $region21
  $region20: #{generate_node_forward.1} parent=0 // pred_region
    _
  $region21: #{generate_node_forward.1} parent=0 // pred_fallthru
    _
  %v21 = vld [vmem:[%s0] sm:$0xff]
  %v22 = vpack.c.bf16 %v21, %v21
  %v23 = vld [vmem:[%s2] sm:$0xff]
  %v24 = vld [vmem:[%s2 + $0x8] sm:$0xff]
  %v25 = vld [vmem:[%s2 + $0x10] sm:$0xff]
  %v26 = vld [vmem:[%s2 + $0x18] sm:$0xff]
  %v27 = vld [vmem:[%s1] sm:$0xff]
  %v28 = vpack.c.bf16 %v27, %v27
  %v29 = vld [vmem:[%s3] sm:$0xff]
  %v30 = vld [vmem:[%s3 + $0x8] sm:$0xff]
  %v31 = vld [vmem:[%s3 + $0x10] sm:$0xff]
  %v32 = vld [vmem:[%s3 + $0x18] sm:$0xff]
  %v37 = vunpack.c.l.b16 %v29
  %v38 = vunpack.c.h.b16 %v29
  %v39 = vunpack.c.l.b16 %v30
  %v40 = vunpack.c.h.b16 %v30
  %v41 = vunpack.c.l.b16 %v31
  %v42 = vunpack.c.h.b16 %v31
  %v43 = vunpack.c.l.b16 %v32
  %v44 = vunpack.c.h.b16 %v32
  %v45 = vpack.c.b16 %v39, %v37
  %v46 = vpack.c.b16 %v40, %v38
  %v47 = vpack.c.b16 %v43, %v41
  %v48 = vpack.c.b16 %v44, %v42
  %vm53 = vcmask 261120
  %v55 = vsel %vm53, %v28, 0
  %57 = vmatpush.bf16.msra.mxu0 0
  %58 = vmatpush.bf16.msra.mxu0 0
  %59 = vmatpush.bf16.msra.mxu0 0
  %60 = vmatpush.bf16.msra.mxu0 0
  %61 = vmatpush.bf16.msra.mxu0 0
  %62 = vmatpush.bf16.msra.mxu0 0
  %63 = vmatpush.bf16.msra.mxu0 %v47
  %64 = vmatpush.bf16.msra.mxu0 %v45
  %65 = vmatmul.bf16.gmra.mxu0 %v55
  %v66 = vpop.f32.mrf.mxu0
  %v67 = vadd.f32 0.0, %v66
  %v68 = vpop.f32.mrf.mxu0
  %69 = vdwg.mxu0
  %70 = vmatpush.bf16.msra.mxu0 0
  %71 = vmatpush.bf16.msra.mxu0 0
  %72 = vmatpush.bf16.msra.mxu0 0
  %73 = vmatpush.bf16.msra.mxu0 0
  %74 = vmatpush.bf16.msra.mxu0 0
  %75 = vmatpush.bf16.msra.mxu0 0
  %76 = vmatpush.bf16.msra.mxu0 %v48
  %77 = vmatpush.bf16.msra.mxu0 %v46
  %78 = vmatmul.bf16.gmra.mxu0 %v55
  %v79 = vpop.f32.mrf.mxu0
  %v80 = vadd.f32 0.0, %v79
  %v81 = vpop.f32.mrf.mxu0
  %82 = vdwg.mxu0
  %v87 = vunpack.c.l.b16 %v23
  %v88 = vunpack.c.h.b16 %v23
  %v89 = vunpack.c.l.b16 %v24
  %v90 = vunpack.c.h.b16 %v24
  %v91 = vunpack.c.l.b16 %v25
  %v92 = vunpack.c.h.b16 %v25
  %v93 = vunpack.c.l.b16 %v26
  %v94 = vunpack.c.h.b16 %v26
  %v95 = vpack.c.b16 %v89, %v87
  %v96 = vpack.c.b16 %v90, %v88
  %v97 = vpack.c.b16 %v93, %v91
  %v98 = vpack.c.b16 %v94, %v92
  %v104 = vsel %vm53, %v22, 0
  %106 = vmatpush.bf16.msra.mxu0 0
  %107 = vmatpush.bf16.msra.mxu0 0
  %108 = vmatpush.bf16.msra.mxu0 0
  %109 = vmatpush.bf16.msra.mxu0 0
  %110 = vmatpush.bf16.msra.mxu0 0
  %111 = vmatpush.bf16.msra.mxu0 0
  %112 = vmatpush.bf16.msra.mxu0 %v97
  %113 = vmatpush.bf16.msra.mxu0 %v95
  %114 = vmatmul.bf16.gmra.mxu0 %v104
  %v115 = vpop.f32.mrf.mxu0
  %v116 = vadd.f32 %v67, %v115
  %v117 = vpop.f32.mrf.mxu0
  %118 = vdwg.mxu0
  %119 = vmatpush.bf16.msra.mxu0 0
  %120 = vmatpush.bf16.msra.mxu0 0
  %121 = vmatpush.bf16.msra.mxu0 0
  %122 = vmatpush.bf16.msra.mxu0 0
  %123 = vmatpush.bf16.msra.mxu0 0
  %124 = vmatpush.bf16.msra.mxu0 0
  %125 = vmatpush.bf16.msra.mxu0 %v98
  %126 = vmatpush.bf16.msra.mxu0 %v96
  %127 = vmatmul.bf16.gmra.mxu0 %v104
  %v128 = vpop.f32.mrf.mxu0
  %v129 = vadd.f32 %v80, %v128
  %v130 = vpop.f32.mrf.mxu0
  %131 = vdwg.mxu0
  %v132 = vld [vmem:[%s4] sm:$0x3]
  %v134 = vperm.slane %v132, 0
  %v135 = vperm.slane %v132, 1
  %v138 = vadd.f32 %v116, %v134
  %v139 = vadd.f32 %v129, %v135
  %v140 = vtanh.pop %v138
  %v141 = vxor.u32 %v139, 2147483648
  %v142 = vmul.f32 %v141, 1.442695
  %v143 = vpow.pop %v142
  %v144 = vadd.f32 %v143, 1.0
  %v145 = vrcp.pop %v144
  %v146 = vmul.f32 %v144, %v145
  %v147 = vsub.f32 1.0, %v146
  %v148 = vmul.f32 %v145, %v147
  %v149 = vadd.f32 %v145, %v148
  %vm150 = vweird.f32 %v144
  %vm151 = vweird.f32 %v145
  %vm152 = vmor %vm150, %vm151
  %v153 = vsel %vm152, %v145, %v149
  %v154 = vand.u32 2147483647, %v144
  %vm155 = vcmp.eq.f32.partialorder %v154, 8.507059e+37
  %v156 = vand.u32 %v144, 2147483648
  %v157 = vor.u32 1.1754944e-38, %v156
  %v158 = vsel %vm155, %v157, %v153
  %v159 = vmul.f32 1.0, %v158
  %v160 = vmul.f32 %v140, %v159
  %161 = vst [vmem:[%s5] sm:$0xff] %v160
  // Predicated region
  $region22: #{generate_node_forward.1} parent=0 // pred_check
    _
  $region23: #{generate_node_forward.1} parent=0 // pred_check_branch
    %163 = sbr.rel (0) target = $region25
  $region24: #{generate_node_forward.1} parent=0 // pred_region
    _
  $region25: #{generate_node_forward.1} parent=0 // pred_fallthru
    _
  // Predicated region
  $region26: #{generate_node_forward.1} parent=0 // pred_check
    _
  $region27: #{generate_node_forward.1} parent=0 // pred_check_branch
    %165 = sbr.rel (0) target = $region29
  $region28: #{generate_node_forward.1} parent=0 // pred_region
    _
  $region29: #{generate_node_forward.1} parent=0 // pred_fallthru
    _

</llo_original>
